<compile_context>
chip_gen: v6e
topology: v6e:2x2x1
jax: 0.10.0
libtpu: 0.0.40
codegen_flags: <defaults>
</compile_context>

<pallas_src>
import functools

import jax
import jax.numpy as jnp
from jax import lax
from jax.experimental import pallas as pl
from jax.experimental.pallas import tpu as pltpu

_EPS = 1e-8            # torch cosine_similarity default eps
_EPS2 = _EPS * _EPS    # clamping each squared norm by eps^2 == each norm by eps


def _round_up(n, m):
    return ((n + m - 1) // m) * m


def _cdiv(a, b):
    return (a + b - 1) // b


def _device_kind():
    try:
        return jax.devices()[0].device_kind.lower()
    except Exception:
        return ""


def _is_v7x(kind):
    return ("v7" in kind) or ("7x" in kind)


def _vmem_budget_bytes(kind):
    """Target bytes for one grid step's working set.

    Sized for the smallest-VMEM generation (v7x: 64 MiB per TensorCore);
    the 128 MiB parts (v5e/v6e) get roomier tiles.
    """
    if any(g in kind for g in ("v3", "v4", "v5", "v6")):
        return 40 << 20
    return 20 << 20


def _mxu_reduce_threshold(kind):
    """Below ~this D the three cross-lane sums bind on the 2 XLUs before HBM
    does; offload them to the otherwise-idle MXU there."""
    if _is_v7x(kind):
        return 512
    if "v6" in kind:
        return 256
    if "v5" in kind:
        return 128
    return 256


def _choose_tile_rows(batch, feat, dtype, kind):
    """Rows per grid step, from the *real* VMEM footprint of one step."""
    feat_pad = _round_up(feat, 128)        # input tiles are lane-padded to 128
    itemsize = jnp.dtype(dtype).itemsize   # bf16 inputs -> 2x bigger tiles
    bytes_per_row = (
        2 * 2 * feat_pad * itemsize        # x & y blocks, double-buffered
        + 4 * feat_pad * 4                 # f32 temporaries (x*y, x*x, y*y, upcasts)
        + 8 * 128 * 4                      # (tb,1) cos2 out (2 bufs) + narrow f32
    )                                      #   columns, each lane-padded to 128
    budget = _vmem_budget_bytes(kind)
    tb = max(8, (budget // bytes_per_row) // 8 * 8)
    # Cap: >=512-row tiles already reach ~85% of the HBM roofline; one giant
    # tile would kill DMA/compute overlap and blow VMEM.
    tb = min(tb, 2048)
    # Keep >=2 (>=4 for big batches) grid steps so tile i+1 prefetches while
    # tile i computes and both v7x TensorCores get work.
    if batch >= 1024:
        tb = min(tb, max(256, _round_up(_cdiv(batch, 4), 8)))
    elif batch >= 512:
        tb = min(tb, max(256, _round_up(_cdiv(batch, 2), 8)))
    # Final clamp: only the *last* tile may be ragged (block never taller than
    # the array); tiny batches use a single full-extent block.
    if batch < 8:
        tb = batch
    else:
        tb = min(tb, (batch // 8) * 8)
    return tb, bytes_per_row


def _make_kernel(feat, use_mxu_reduce):
    def kernel(x_ref, y_ref, out_ref):
        x = x_ref[...]                       # (tb, D)
        y = y_ref[...]                       # (tb, D)
        if not (use_mxu_reduce and x.dtype == jnp.bfloat16):
            # Explicit f32 upcast (required on v5e; the XLU-sum path needs f32
            # accumulation anyway).  bf16 + MXU path keeps the products at
            # input precision and lets the MXU accumulate in f32.
            x = x.astype(jnp.float32)
            y = y.astype(jnp.float32)

        xy = x * y
        xx = x * x
        yy = y * y

        if use_mxu_reduce:
            # Lane-reduce on the idle MXU: contract against a ones matrix with
            # f32 accumulation and take lane 0.  Keeps the 2 XLUs off the
            # critical path for small/moderate D.
            ones = jnp.ones((feat, 128), dtype=xy.dtype)
            dims = (((1,), (0,)), ((), ()))

            def lane_sum(p):
                return lax.dot_general(
                    p, ones, dims, preferred_element_type=jnp.float32)[:, :1]

            dot, sxx, syy = lane_sum(xy), lane_sum(xx), lane_sum(yy)
        else:
            dot = jnp.sum(xy, axis=-1, keepdims=True)   # (tb, 1)
            sxx = jnp.sum(xx, axis=-1, keepdims=True)
            syy = jnp.sum(yy, axis=-1, keepdims=True)

        # torch cosine_similarity eps semantics: clamp each norm by eps
        # (== clamping each squared norm by eps^2).  rsqrt rides the EUP slot;
        # divide-then-square avoids the dot^2 overflow edge case.
        inv_nx = lax.rsqrt(jnp.maximum(sxx, _EPS2))
        inv_ny = lax.rsqrt(jnp.maximum(syy, _EPS2))
        cos = dot * inv_nx * inv_ny
        out_ref[...] = cos * cos             # (tb, 1) per-row cos^2

    return kernel


@functools.partial(jax.jit, static_argnames=("reduction",))
def squared_similarity(x, y, x_label, y_label, reduction="mean"):
    """Pallas TPU implementation of SquaredSimilarity.forward."""
    if reduction not in ("mean", "sum", "none"):
        raise ValueError(f"unknown reduction: {reduction!r}")

    batch, feat = x.shape
    kind = _device_kind()
    tb, bytes_per_row = _choose_tile_rows(batch, feat, x.dtype, kind)
    num_tiles = _cdiv(batch, tb)   # no wrapper-side padding: Pallas handles
                                   # the ragged last tile (writes are masked)
    use_mxu_reduce = feat <= _mxu_reduce_threshold(kind)

    # VMEM limit from the computed footprint, <=48 MiB so v7x (64 MiB/TC)
    # keeps headroom; v5e/v6e (128 MiB) are unaffected.
    vmem_limit = int(min(48 << 20,
                         max(16 << 20, tb * bytes_per_row + (4 << 20))))

    # v7x has 2 TensorCores: split the batch axis across them when there is
    # more than one tile.  Plain PARALLEL is the safe choice on 1-TC chips.
    if _is_v7x(kind) and num_tiles >= 2:
        semantics = (pltpu.CORE_PARALLEL,)
    else:
        semantics = (pltpu.PARALLEL,)

    # TODO(synk): for small D on the 128-MiB parts, pipeline_mode=pl.Buffered(3)
    # on the x/y specs deepens prefetch (few-% win); for huge D (>~16K) add an
    # inner 'arbitrary' grid axis over D instead of shrinking tb further.
    cos2 = pl.pallas_call(
        _make_kernel(feat, use_mxu_reduce),
        out_shape=jax.ShapeDtypeStruct((batch, 1), jnp.float32),
        grid=(num_tiles,),
        in_specs=[
            pl.BlockSpec((tb, feat), lambda i: (i, 0)),   # x row-tile
            pl.BlockSpec((tb, feat), lambda i: (i, 0)),   # y row-tile
        ],
        out_specs=pl.BlockSpec((tb, 1), lambda i: (i, 0)),
        compiler_params=pltpu.CompilerParams(
            dimension_semantics=semantics,
            vmem_limit_bytes=vmem_limit,
        ),
    )(x, y)[:, 0]

    # Label handling + reduction over B scalars (negligible HBM traffic) stay
    # in the wrapper: removes the sign input stream entirely and keeps the
    # tail-tile handling trivially correct.
    same = x_label.reshape(-1) == y_label.reshape(-1)
    loss = jnp.where(same, cos2, 1.0 - cos2)

    if reduction == "mean":
        return loss.mean()
    if reduction == "sum":
        return loss.sum()
    return loss


def _reference(x, y, x_label, y_label, reduction="mean"):
    """Pure-JAX reference with torch.cosine_similarity eps semantics."""
    x = x.astype(jnp.float32)
    y = y.astype(jnp.float32)
    nx = jnp.maximum(jnp.sqrt(jnp.sum(x * x, axis=-1)), _EPS)
    ny = jnp.maximum(jnp.sqrt(jnp.sum(y * y, axis=-1)), _EPS)
    cos2 = (jnp.sum(x * y, axis=-1) / (nx * ny)) ** 2
    same = x_label.reshape(-1) == y_label.reshape(-1)
    loss = jnp.where(same, cos2, 1.0 - cos2)
    if reduction == "mean":
        return loss.mean()
    if reduction == "sum":
        return loss.sum()
    return loss


if __name__ == "__main__":
    # (batch, hidden) embedding pairs + (batch,) int labels, matching forward().
    # The second case exercises the ragged last tile (batch % 8 != 0) and a
    # non-128-multiple hidden size (and, depending on the chip, the XLU path).
    key = jax.random.PRNGKey(0)
    for B, D in ((8, 32), (13, 300)):
        key, kx, ky, kxl, kyl = jax.random.split(key, 5)
        x = jax.random.normal(kx, (B, D), dtype=jnp.float32)
        y = jax.random.normal(ky, (B, D), dtype=jnp.float32)
        x_label = jax.random.randint(kxl, (B,), 0, 3, dtype=jnp.int32)
        y_label = jax.random.randint(kyl, (B,), 0, 3, dtype=jnp.int32)

        for reduction in ("mean", "sum", "none"):
            out = jax.block_until_ready(
                squared_similarity(x, y, x_label, y_label, reduction=reduction))
            ref = _reference(x, y, x_label, y_label, reduction=reduction)
            assert jnp.allclose(out, ref, atol=1e-3, rtol=1e-3), (
                B, D, reduction, out, ref)

    print("KERNEL_OK")
</pallas_src>

<mosaic_0001>
module attributes {stable_mosaic.version = 11 : i64} {
  func.func @kernel(%arg0: i32, %arg1: memref<8x32xf32, #tpu.memory_space<vmem>>, %arg2: memref<8x32xf32, #tpu.memory_space<vmem>>, %arg3: memref<8x1xf32, #tpu.memory_space<vmem>>) attributes {dimension_semantics = [#tpu.dimension_semantics<parallel>], iteration_bounds = array<i64: 1>, scalar_prefetch = 0 : i64, scratch_operands = 0 : i64, tpu.core_type = #tpu.core_type<tc>, window_params = [{transform_indices = @transform_0, window_bounds = array<i64: 8, 32>}, {transform_indices = @transform_1, window_bounds = array<i64: 8, 32>}, {transform_indices = @transform_2, window_bounds = array<i64: 8, 1>}]} {
    %c0 = arith.constant 0 : index
    %c0_0 = arith.constant 0 : index
    %0 = vector.load %arg1[%c0, %c0_0] : memref<8x32xf32, #tpu.memory_space<vmem>>, vector<8x32xf32>
    %c0_1 = arith.constant 0 : index
    %c0_2 = arith.constant 0 : index
    %1 = vector.load %arg2[%c0_1, %c0_2] : memref<8x32xf32, #tpu.memory_space<vmem>>, vector<8x32xf32>
    %2 = arith.mulf %0, %1 : vector<8x32xf32>
    %3 = arith.mulf %0, %0 : vector<8x32xf32>
    %4 = arith.mulf %1, %1 : vector<8x32xf32>
    %cst = arith.constant 1.000000e+00 : f32
    %5 = vector.broadcast %cst : f32 to vector<32x128xf32>
    %cst_3 = arith.constant dense<0.000000e+00> : vector<8x128xf32>
    %6 = tpu.matmul %2, %5, %cst_3 {dimension_numbers = #tpu.dot_dimension_numbers<[1], [0], [0], [1], [0, 0, 1, 1], [], []>} : vector<8x32xf32>, vector<32x128xf32>, vector<8x128xf32> -> vector<8x128xf32>
    %7 = vector.extract_strided_slice %6 {offsets = [0, 0], sizes = [8, 1], strides = [1, 1]} : vector<8x128xf32> to vector<8x1xf32>
    %cst_4 = arith.constant dense<0.000000e+00> : vector<8x128xf32>
    %8 = tpu.matmul %3, %5, %cst_4 {dimension_numbers = #tpu.dot_dimension_numbers<[1], [0], [0], [1], [0, 0, 1, 1], [], []>} : vector<8x32xf32>, vector<32x128xf32>, vector<8x128xf32> -> vector<8x128xf32>
    %9 = vector.extract_strided_slice %8 {offsets = [0, 0], sizes = [8, 1], strides = [1, 1]} : vector<8x128xf32> to vector<8x1xf32>
    %cst_5 = arith.constant dense<0.000000e+00> : vector<8x128xf32>
    %10 = tpu.matmul %4, %5, %cst_5 {dimension_numbers = #tpu.dot_dimension_numbers<[1], [0], [0], [1], [0, 0, 1, 1], [], []>} : vector<8x32xf32>, vector<32x128xf32>, vector<8x128xf32> -> vector<8x128xf32>
    %11 = vector.extract_strided_slice %10 {offsets = [0, 0], sizes = [8, 1], strides = [1, 1]} : vector<8x128xf32> to vector<8x1xf32>
    %cst_6 = arith.constant 1.000000e-16 : f32
    %12 = vector.broadcast %cst_6 : f32 to vector<8x1xf32>
    %13 = arith.maximumf %9, %12 : vector<8x1xf32>
    %14 = math.rsqrt %13 : vector<8x1xf32>
    %cst_7 = arith.constant 1.000000e-16 : f32
    %15 = vector.broadcast %cst_7 : f32 to vector<8x1xf32>
    %16 = arith.maximumf %11, %15 : vector<8x1xf32>
    %17 = math.rsqrt %16 : vector<8x1xf32>
    %18 = arith.mulf %7, %14 : vector<8x1xf32>
    %19 = arith.mulf %18, %17 : vector<8x1xf32>
    %20 = arith.mulf %19, %19 : vector<8x1xf32>
    %c0_8 = arith.constant 0 : index
    %c0_9 = arith.constant 0 : index
    %21 = vector.load %arg3[%c0_8, %c0_9] : memref<8x1xf32, #tpu.memory_space<vmem>>, vector<8x1xf32>
    tpu.vector_store %arg3[%c0_8, %c0_9], %20 {strides = array<i32>} : memref<8x1xf32, #tpu.memory_space<vmem>>, vector<8x1xf32>,
    return
  }
  func.func @transform_0(%arg0: i32) -> (i32, i32) {
    %c0_i32 = arith.constant 0 : i32
    %c0_i32_0 = arith.constant 0 : i32
    return %arg0, %c0_i32 : i32, i32
  }
  func.func @transform_1(%arg0: i32) -> (i32, i32) {
    %c0_i32 = arith.constant 0 : i32
    %c0_i32_0 = arith.constant 0 : i32
    return %arg0, %c0_i32 : i32, i32
  }
  func.func @transform_2(%arg0: i32) -> (i32, i32) {
    %c0_i32 = arith.constant 0 : i32
    %c0_i32_0 = arith.constant 0 : i32
    return %arg0, %c0_i32 : i32, i32
  }
}

</mosaic_0001>

<llo_original>
// kernel: squared_similarity.1
$region0: #{squared_similarity.1}
  #allocation0 [shape = 'u32[]', space=smem, size = 0x4, offset = 0x4, fixed_abs, tag = 'smem constant byte address 0x4 - core index']
  #allocation1 [shape = 'u32[144,128]{1,0:T(1,128)}', space=vmem, size = 0x12000, scoped, tag = 'internal scratch']
  %s0 = inlined_call_operand.hbm [shape: f32[8,32], index: 0, kind: input, shape index: {}]
  %s1 = inlined_call_operand.hbm [shape: f32[8,32], index: 1, kind: input, shape index: {}]
  %s2 = inlined_call_operand.vmem [shape: f32[8,1], index: 2, kind: output, shape index: {}]
  %s3 = sld [smem:[#allocation0]]
  $region26: #{squared_similarity.1} parent=0
    _
  %s5 = ssub.s32 1, %s3
  %s6 = scalar_select 0, %s5, %s3
  $region1: #{squared_similarity.1} parent=0
    #allocation2 [shape = 'u8[4096]{0}', space=vmem, size = 0x1000, scoped, tag = 'input window, operand 0, single buffered']
    #allocation3 [shape = 's32[1]{0}', space=sflag, size = 0x4, scoped, tag = 'scoped memory for squared_similarity.1']
    #allocation4 [shape = 'u8[4096]{0}', space=vmem, size = 0x1000, scoped, tag = 'input window, operand 1, single buffered']
    #allocation5 [shape = 's32[1]{0}', space=sflag, size = 0x4, scoped, tag = 'scoped memory for squared_similarity.1']
    %7 = vsyncpa [#allocation3], 0
    %8 = vsyncpa [#allocation5], 0
    // Predicated region
    $region2: #{squared_similarity.1} parent=1 // pred_check
      _
    $region3: #{squared_similarity.1} parent=1 // pred_check_branch
      %10 = sbr.rel (0) target = $region5
    $region4: #{squared_similarity.1} parent=1 // pred_region
      %s12 = ssub.s32 128, 128
      %13 = vsyncadd [#allocation3], %s12
      %s15 = sshll.u32 [#allocation2], 4
      %s16 = int_to_ptr.vmem [resolvable:$true] %s15
      %18 = dma.hbm_to_vmem [thread:$0]  %s0, 128, %s16, [#allocation3]
    $region5: #{squared_similarity.1} parent=1 // pred_fallthru
      _
    // Predicated region
    $region6: #{squared_similarity.1} parent=1 // pred_check
      _
    $region7: #{squared_similarity.1} parent=1 // pred_check_branch
      %20 = sbr.rel (0) target = $region9
    $region8: #{squared_similarity.1} parent=1 // pred_region
      %s22 = ssub.s32 128, 128
      %23 = vsyncadd [#allocation5], %s22
      %s25 = sshll.u32 [#allocation4], 4
      %s26 = int_to_ptr.vmem [resolvable:$true] %s25
      %28 = dma.hbm_to_vmem [thread:$0]  %s1, 128, %s26, [#allocation5]
    $region9: #{squared_similarity.1} parent=1 // pred_fallthru
      _
    // Predicated region
    $region10: #{squared_similarity.1} parent=1 // pred_check
      _
    $region11: #{squared_similarity.1} parent=1 // pred_check_branch
      %30 = sbr.rel (0) target = $region13
    $region12: #{squared_similarity.1} parent=1 // pred_region
      %31 = dma.done [#allocation3], 128
    $region13: #{squared_similarity.1} parent=1 // pred_fallthru
      _
    // Predicated region
    $region14: #{squared_similarity.1} parent=1 // pred_check
      _
    $region15: #{squared_similarity.1} parent=1 // pred_check_branch
      %33 = sbr.rel (0) target = $region17
    $region16: #{squared_similarity.1} parent=1 // pred_region
      %34 = dma.done [#allocation5], 128
    $region17: #{squared_similarity.1} parent=1 // pred_fallthru
      _
    %v35 = vld [vmem:[#allocation2] sm:$0xff]
    %v36 = vld [vmem:[#allocation4] sm:$0xff]
    %v37 = vmul.f32 %v35, %v36
    %v38 = vmul.f32 %v35, %v35
    %v39 = vmul.f32 %v36, %v36
    %vm40 = vcmask 261120
    %v42 = vsel %vm40, %v37, 0
    %44 = vmatprep.subr.mxu0 0.0
    %45 = vmatpush1.msra.mxu0 0.0
    %46 = vmatprep.subr.mxu0 0.0
    %47 = vmatpush1.msra.mxu0 0.0
    %48 = vmatprep.subr.mxu0 0.0
    %49 = vmatpush1.msra.mxu0 0.0
    %50 = vmatprep.subr.mxu0 0.0
    %51 = vmatpush1.msra.mxu0 0.0
    %52 = vmatprep.subr.mxu0 0.0
    %53 = vmatpush1.msra.mxu0 0.0
    %54 = vmatprep.subr.mxu0 0.0
    %55 = vmatpush1.msra.mxu0 0.0
    %56 = vmatprep.subr.mxu0 0.0
    %57 = vmatpush1.msra.mxu0 0.0
    %58 = vmatprep.subr.mxu0 0.0
    %59 = vmatpush1.msra.mxu0 0.0
    %60 = vmatprep.subr.mxu0 0.0
    %61 = vmatpush1.msra.mxu0 0.0
    %62 = vmatprep.subr.mxu0 0.0
    %63 = vmatpush1.msra.mxu0 0.0
    %64 = vmatprep.subr.mxu0 0.0
    %65 = vmatpush1.msra.mxu0 0.0
    %66 = vmatprep.subr.mxu0 0.0
    %67 = vmatpush1.msra.mxu0 0.0
    %68 = vmatprep.subr.mxu0 0.0
    %69 = vmatpush1.msra.mxu0 1.0
    %70 = vmatprep.subr.mxu0 0.0
    %71 = vmatpush1.msra.mxu0 1.0
    %72 = vmatprep.subr.mxu0 0.0
    %73 = vmatpush1.msra.mxu0 1.0
    %74 = vmatprep.subr.mxu0 0.0
    %75 = vmatpush1.msra.mxu0 1.0
    %76 = vmatprep.subr.mxu0 0.0
    %77 = vmatpush2.msra.mxu0 0.0
    %78 = vmatprep.subr.mxu0 0.0
    %79 = vmatpush2.msra.mxu0 0.0
    %80 = vmatprep.subr.mxu0 0.0
    %81 = vmatpush2.msra.mxu0 0.0
    %82 = vmatprep.subr.mxu0 0.0
    %83 = vmatpush2.msra.mxu0 0.0
    %84 = vmatprep.subr.mxu0 0.0
    %85 = vmatpush2.msra.mxu0 0.0
    %86 = vmatprep.subr.mxu0 0.0
    %87 = vmatpush2.msra.mxu0 0.0
    %88 = vmatprep.subr.mxu0 0.0
    %89 = vmatpush2.msra.mxu0 0.0
    %90 = vmatprep.subr.mxu0 0.0
    %91 = vmatpush2.msra.mxu0 0.0
    %92 = vmatprep.subr.mxu0 0.0
    %93 = vmatpush2.msra.mxu0 0.0
    %94 = vmatprep.subr.mxu0 0.0
    %95 = vmatpush2.msra.mxu0 0.0
    %96 = vmatprep.subr.mxu0 0.0
    %97 = vmatpush2.msra.mxu0 0.0
    %98 = vmatprep.subr.mxu0 0.0
    %99 = vmatpush2.msra.mxu0 0.0
    %100 = vmatprep.subr.mxu0 0.0
    %101 = vmatpush2.msra.mxu0 0.0
    %102 = vmatprep.subr.mxu0 0.0
    %103 = vmatpush2.msra.mxu0 0.0
    %104 = vmatprep.subr.mxu0 0.0
    %105 = vmatpush2.msra.mxu0 0.0
    %106 = vmatprep.subr.mxu0 0.0
    %107 = vmatpush2.msra.mxu0 0.0
    %108 = vmatprep.mubr.f32.mxu0 0.0
    %109 = vmatmul.mubr.f32.gmra.mxu0 %v42
    %v110 = vpop.f32.mrf.mxu0
    %v111 = vadd.f32 0.0, %v110
    %v112 = vpop.f32.mrf.mxu0
    %113 = vdwg.mxu0
    %v115 = vsel %vm40, %v38, 0
    %117 = vmatprep.subr.mxu0 0.0
    %118 = vmatpush1.msra.mxu0 0.0
    %119 = vmatprep.subr.mxu0 0.0
    %120 = vmatpush1.msra.mxu0 0.0
    %121 = vmatprep.subr.mxu0 0.0
    %122 = vmatpush1.msra.mxu0 0.0
    %123 = vmatprep.subr.mxu0 0.0
    %124 = vmatpush1.msra.mxu0 0.0
    %125 = vmatprep.subr.mxu0 0.0
    %126 = vmatpush1.msra.mxu0 0.0
    %127 = vmatprep.subr.mxu0 0.0
    %128 = vmatpush1.msra.mxu0 0.0
    %129 = vmatprep.subr.mxu0 0.0
    %130 = vmatpush1.msra.mxu0 0.0
    %131 = vmatprep.subr.mxu0 0.0
    %132 = vmatpush1.msra.mxu0 0.0
    %133 = vmatprep.subr.mxu0 0.0
    %134 = vmatpush1.msra.mxu0 0.0
    %135 = vmatprep.subr.mxu0 0.0
    %136 = vmatpush1.msra.mxu0 0.0
    %137 = vmatprep.subr.mxu0 0.0
    %138 = vmatpush1.msra.mxu0 0.0
    %139 = vmatprep.subr.mxu0 0.0
    %140 = vmatpush1.msra.mxu0 0.0
    %141 = vmatprep.subr.mxu0 0.0
    %142 = vmatpush1.msra.mxu0 1.0
    %143 = vmatprep.subr.mxu0 0.0
    %144 = vmatpush1.msra.mxu0 1.0
    %145 = vmatprep.subr.mxu0 0.0
    %146 = vmatpush1.msra.mxu0 1.0
    %147 = vmatprep.subr.mxu0 0.0
    %148 = vmatpush1.msra.mxu0 1.0
    %149 = vmatprep.subr.mxu0 0.0
    %150 = vmatpush2.msra.mxu0 0.0
    %151 = vmatprep.subr.mxu0 0.0
    %152 = vmatpush2.msra.mxu0 0.0
    %153 = vmatprep.subr.mxu0 0.0
    %154 = vmatpush2.msra.mxu0 0.0
    %155 = vmatprep.subr.mxu0 0.0
    %156 = vmatpush2.msra.mxu0 0.0
    %157 = vmatprep.subr.mxu0 0.0
    %158 = vmatpush2.msra.mxu0 0.0
    %159 = vmatprep.subr.mxu0 0.0
    %160 = vmatpush2.msra.mxu0 0.0
    %161 = vmatprep.subr.mxu0 0.0
    %162 = vmatpush2.msra.mxu0 0.0
    %163 = vmatprep.subr.mxu0 0.0
    %164 = vmatpush2.msra.mxu0 0.0
    %165 = vmatprep.subr.mxu0 0.0
    %166 = vmatpush2.msra.mxu0 0.0
    %167 = vmatprep.subr.mxu0 0.0
    %168 = vmatpush2.msra.mxu0 0.0
    %169 = vmatprep.subr.mxu0 0.0
    %170 = vmatpush2.msra.mxu0 0.0
    %171 = vmatprep.subr.mxu0 0.0
    %172 = vmatpush2.msra.mxu0 0.0
    %173 = vmatprep.subr.mxu0 0.0
    %174 = vmatpush2.msra.mxu0 0.0
    %175 = vmatprep.subr.mxu0 0.0
    %176 = vmatpush2.msra.mxu0 0.0
    %177 = vmatprep.subr.mxu0 0.0
    %178 = vmatpush2.msra.mxu0 0.0
    %179 = vmatprep.subr.mxu0 0.0
    %180 = vmatpush2.msra.mxu0 0.0
    %181 = vmatprep.mubr.f32.mxu0 0.0
    %182 = vmatmul.mubr.f32.gmra.mxu0 %v115
    %v183 = vpop.f32.mrf.mxu0
    %v184 = vadd.f32 0.0, %v183
    %v185 = vpop.f32.mrf.mxu0
    %186 = vdwg.mxu0
    %v188 = vsel %vm40, %v39, 0
    %190 = vmatprep.subr.mxu0 0.0
    %191 = vmatpush1.msra.mxu0 0.0
    %192 = vmatprep.subr.mxu0 0.0
    %193 = vmatpush1.msra.mxu0 0.0
    %194 = vmatprep.subr.mxu0 0.0
    %195 = vmatpush1.msra.mxu0 0.0
    %196 = vmatprep.subr.mxu0 0.0
    %197 = vmatpush1.msra.mxu0 0.0
    %198 = vmatprep.subr.mxu0 0.0
    %199 = vmatpush1.msra.mxu0 0.0
    %200 = vmatprep.subr.mxu0 0.0
    %201 = vmatpush1.msra.mxu0 0.0
    %202 = vmatprep.subr.mxu0 0.0
    %203 = vmatpush1.msra.mxu0 0.0
    %204 = vmatprep.subr.mxu0 0.0
    %205 = vmatpush1.msra.mxu0 0.0
    %206 = vmatprep.subr.mxu0 0.0
    %207 = vmatpush1.msra.mxu0 0.0
    %208 = vmatprep.subr.mxu0 0.0
    %209 = vmatpush1.msra.mxu0 0.0
    %210 = vmatprep.subr.mxu0 0.0
    %211 = vmatpush1.msra.mxu0 0.0
    %212 = vmatprep.subr.mxu0 0.0
    %213 = vmatpush1.msra.mxu0 0.0
    %214 = vmatprep.subr.mxu0 0.0
    %215 = vmatpush1.msra.mxu0 1.0
    %216 = vmatprep.subr.mxu0 0.0
    %217 = vmatpush1.msra.mxu0 1.0
    %218 = vmatprep.subr.mxu0 0.0
    %219 = vmatpush1.msra.mxu0 1.0
    %220 = vmatprep.subr.mxu0 0.0
    %221 = vmatpush1.msra.mxu0 1.0
    %222 = vmatprep.subr.mxu0 0.0
    %223 = vmatpush2.msra.mxu0 0.0
    %224 = vmatprep.subr.mxu0 0.0
    %225 = vmatpush2.msra.mxu0 0.0
    %226 = vmatprep.subr.mxu0 0.0
    %227 = vmatpush2.msra.mxu0 0.0
    %228 = vmatprep.subr.mxu0 0.0
    %229 = vmatpush2.msra.mxu0 0.0
    %230 = vmatprep.subr.mxu0 0.0
    %231 = vmatpush2.msra.mxu0 0.0
    %232 = vmatprep.subr.mxu0 0.0
    %233 = vmatpush2.msra.mxu0 0.0
    %234 = vmatprep.subr.mxu0 0.0
    %235 = vmatpush2.msra.mxu0 0.0
    %236 = vmatprep.subr.mxu0 0.0
    %237 = vmatpush2.msra.mxu0 0.0
    %238 = vmatprep.subr.mxu0 0.0
    %239 = vmatpush2.msra.mxu0 0.0
    %240 = vmatprep.subr.mxu0 0.0
    %241 = vmatpush2.msra.mxu0 0.0
    %242 = vmatprep.subr.mxu0 0.0
    %243 = vmatpush2.msra.mxu0 0.0
    %244 = vmatprep.subr.mxu0 0.0
    %245 = vmatpush2.msra.mxu0 0.0
    %246 = vmatprep.subr.mxu0 0.0
    %247 = vmatpush2.msra.mxu0 0.0
    %248 = vmatprep.subr.mxu0 0.0
    %249 = vmatpush2.msra.mxu0 0.0
    %250 = vmatprep.subr.mxu0 0.0
    %251 = vmatpush2.msra.mxu0 0.0
    %252 = vmatprep.subr.mxu0 0.0
    %253 = vmatpush2.msra.mxu0 0.0
    %254 = vmatprep.mubr.f32.mxu0 0.0
    %255 = vmatmul.mubr.f32.gmra.mxu0 %v188
    %v256 = vpop.f32.mrf.mxu0
    %v257 = vadd.f32 0.0, %v256
    %v258 = vpop.f32.mrf.mxu0
    %259 = vdwg.mxu0
    %v260 = vmax.f32 %v184, 1e-16
    %v261 = vrsqrt.pop %v260
    %v262 = vmax.f32 %v257, 1e-16
    %v263 = vrsqrt.pop %v262
    %v264 = vmul.f32 %v111, %v261
    %v265 = vmul.f32 %v264, %v263
    %v266 = vmul.f32 %v265, %v265
    %vm267 = vcmask 7168
    %268 = vst.msk [vmem:[%s2] sm:$0xff] %vm267, %v266
    // Predicated region
    $region18: #{squared_similarity.1} parent=1 // pred_check
      _
    $region19: #{squared_similarity.1} parent=1 // pred_check_branch
      %270 = sbr.rel (0) target = $region21
    $region20: #{squared_similarity.1} parent=1 // pred_region
      _
    $region21: #{squared_similarity.1} parent=1 // pred_fallthru
      _
    // Predicated region
    $region22: #{squared_similarity.1} parent=1 // pred_check
      _
    $region23: #{squared_similarity.1} parent=1 // pred_check_branch
      %272 = sbr.rel (0) target = $region25
    $region24: #{squared_similarity.1} parent=1 // pred_region
      _
    $region25: #{squared_similarity.1} parent=1 // pred_fallthru
      _
    %273 = vsyncpa [#allocation3], 1
    %274 = vsyncpa [#allocation5], 1

</llo_original>
